<compile_context>
chip_gen: v5e
topology: v5e:2x2
jax: 0.10.0
libtpu: 0.0.40
codegen_flags: <defaults>
</compile_context>

<pallas_src>
import functools
import math

import jax
import jax.numpy as jnp
import numpy as np
from jax import lax
from jax.experimental import pallas as pl
from jax.experimental.pallas import tpu as pltpu


# ---------------------------------------------------------------------------
# hardware helpers (generation-aware VMEM budget / compute dtype)
# ---------------------------------------------------------------------------
@functools.lru_cache(maxsize=None)
def _tpu_generation():
    try:
        kind = jax.devices()[0].device_kind.lower()
    except Exception:
        return 0
    for g in (7, 6, 5, 4, 3):
        if "v%d" % g in kind:
            return g
    return 0


@functools.lru_cache(maxsize=None)
def _vmem_limit_bytes():
    cap = None
    try:
        info = pltpu.get_tpu_info()
        cap = getattr(info, "vmem_capacity_bytes", None)
    except Exception:
        cap = None
    if not cap:
        cap = (64 << 20) if _tpu_generation() >= 7 else (128 << 20)
    # ~3/4 of physical, capped at 100 MiB -> ~48 MiB on v7x, ~96 MiB on v5e/v6e.
    return int(min(cap * 3 // 4, 100 << 20))


def _compute_dtype():
    # v5e has no bf16 VPU/EUP -> keep RoPE math in f32 there; bf16 on v6e/v7x.
    return jnp.float32 if _tpu_generation() == 5 else jnp.bfloat16


# ---------------------------------------------------------------------------
# small helpers
# ---------------------------------------------------------------------------
def _round_up(x, m):
    return ((x + m - 1) // m) * m


def _pick_tile(dim, preferred, align):
    """Largest tile <= preferred that divides dim and is a multiple of align.
    Falls back to the full dim (always a legal Pallas block)."""
    if dim <= preferred:
        return dim
    t = (preferred // align) * align
    while t >= align:
        if dim % t == 0:
            return t
        t -= align
    return dim


def _pick_kv_tile(s_pad):
    for ts in (512, 384, 256, 128):
        if s_pad % ts == 0:
            return ts
    return s_pad


def _ab_perm(embed_dim, head_dim):
    """new feature index -> original feature index for the global
    [all a-halves | all b-halves] rotate-half layout (a=even, b=odd pair member)."""
    half = head_dim // 2
    e_half = embed_dim // 2
    j = np.arange(embed_dim)
    jj = np.where(j < e_half, j, j - e_half)
    h = jj // half
    i = jj % half
    return h * head_dim + 2 * i + (j >= e_half).astype(np.int64)


def rope_tables(seq_len, head_dim, base=10000.0):
    """cos/sin tables of shape (seq, head_dim//2), torchtune theta convention."""
    theta = 1.0 / (base ** (jnp.arange(0, head_dim, 2, dtype=jnp.float32) / head_dim))
    pos = jnp.arange(seq_len, dtype=jnp.float32)
    ang = pos[:, None] * theta[None, :]
    return jnp.cos(ang), jnp.sin(ang)


def _canonical_bias(attn_mask, distance_bias, N, H, L, S):
    """Combine attn_mask / distance_bias into one additive f32 bias (Nb, Hb, L, S)
    with Nb in {1,N}, Hb in {1,H}; returns None if both absent."""
    def canon(m):
        m = jnp.asarray(m)
        if m.dtype == jnp.bool_:
            m = jnp.where(m, -jnp.inf, 0.0).astype(jnp.float32)
        else:
            m = m.astype(jnp.float32)
        if m.ndim == 2:                       # (L, S)
            return m[None, None]
        if m.ndim == 3:                       # (1, L, S) or (N*H, L, S)
            return m[None] if m.shape[0] == 1 else m.reshape(N, H, L, S)
        return m                              # already 4-D
    parts = [canon(x) for x in (attn_mask, distance_bias) if x is not None]
    if not parts:
        return None
    bias = parts[0]
    for p in parts[1:]:
        bias = bias + p
    return bias


# ---------------------------------------------------------------------------
# tiled linear:  (M, K) @ (K, Dout) + bias   (bf16 MXU, f32 accumulate)
# optionally emits the transposed result (Dout, M) so k^T comes straight out of
# the projection (the transpose lives in the matmul kernel where the XLU is idle).
# ---------------------------------------------------------------------------
def _linear_kernel(x_ref, wt_ref, b_ref, o_ref, acc_ref):
    @pl.when(pl.program_id(2) == 0)
    def _init():
        acc_ref[...] = jnp.zeros(acc_ref.shape, acc_ref.dtype)

    acc_ref[...] += jnp.dot(x_ref[...].astype(jnp.bfloat16), wt_ref[...],
                            preferred_element_type=jnp.float32)

    @pl.when(pl.program_id(2) == pl.num_programs(2) - 1)
    def _fin():
        o_ref[...] = (acc_ref[...] + b_ref[...]).astype(o_ref.dtype)


def _linear_t_kernel(x_ref, wt_ref, b_ref, o_ref, acc_ref):
    @pl.when(pl.program_id(2) == 0)
    def _init():
        acc_ref[...] = jnp.zeros(acc_ref.shape, acc_ref.dtype)

    acc_ref[...] += jnp.dot(x_ref[...].astype(jnp.bfloat16), wt_ref[...],
                            preferred_element_type=jnp.float32)

    @pl.when(pl.program_id(2) == pl.num_programs(2) - 1)
    def _fin():
        o_ref[...] = (acc_ref[...] + b_ref[...]).T.astype(o_ref.dtype)


def linear_pallas(x2d, wt, b, out_dtype, *, transpose_out=False,
                  tm=512, tn=2048, tk=512, vmem_limit=None):
    """x2d: (M, K) bf16; wt: (K, Dout) bf16 (pre-transposed); b: (1, Dout) f32.
    Returns (M, Dout), or (Dout, M) when transpose_out=True."""
    M, K = x2d.shape
    Dout = wt.shape[1]
    TM = _pick_tile(M, tm, 128 if transpose_out else 16)
    TN = _pick_tile(Dout, tn, 128)
    TK = _pick_tile(K, tk, 128)
    grid = (M // TM, Dout // TN, K // TK)
    if transpose_out:
        kernel = _linear_t_kernel
        out_shape = jax.ShapeDtypeStruct((Dout, M), out_dtype)
        out_specs = pl.BlockSpec((TN, TM), lambda i, j, k: (j, i))
    else:
        kernel = _linear_kernel
        out_shape = jax.ShapeDtypeStruct((M, Dout), out_dtype)
        out_specs = pl.BlockSpec((TM, TN), lambda i, j, k: (i, j))
    return pl.pallas_call(
        kernel,
        out_shape=out_shape,
        grid=grid,
        in_specs=[
            pl.BlockSpec((TM, TK), lambda i, j, k: (i, k)),
            pl.BlockSpec((TK, TN), lambda i, j, k: (k, j)),
            pl.BlockSpec((1, TN), lambda i, j, k: (0, j)),
        ],
        out_specs=out_specs,
        scratch_shapes=[pltpu.VMEM((TM, TN), jnp.float32)],
        compiler_params=pltpu.CompilerParams(
            dimension_semantics=("parallel", "parallel", "arbitrary"),
            vmem_limit_bytes=vmem_limit or _vmem_limit_bytes()),
    )(x2d, wt, b)


# ---------------------------------------------------------------------------
# attention kernel A: single pass over the full (padded) S, emits weights.
# q: (N, L, E) in global a|b layout (scale folded in), kt: (E, N*S_pad) a|b layout,
# v: (N, S_pad, E) original layout.
# ---------------------------------------------------------------------------
def _attn_full_kernel(*refs, num_head, head_dim, s_valid, use_rope, has_bias,
                      bias_heads, weights_mode, compute_dtype):
    i = 0
    bias_ref = refs[i] if has_bias else None
    if has_bias:
        i += 1
    q_ref, kt_ref, v_ref = refs[i], refs[i + 1], refs[i + 2]
    i += 3
    if use_rope:
        cq_ref, sq_ref, ck_ref, sk_ref = refs[i:i + 4]
        i += 4
    o_ref = refs[i]
    w_ref = refs[i + 1]

    H, hd = num_head, head_dim
    half = hd // 2
    E = H * hd
    Eh = E // 2
    L = q_ref.shape[1]
    S_pad = kt_ref.shape[1]

    qkdt = compute_dtype if use_rope else jnp.bfloat16
    q = q_ref[0].astype(qkdt)            # (L, E)
    kt = kt_ref[...].astype(qkdt)        # (E, S_pad)
    qa, qb = q[:, :Eh], q[:, Eh:]
    ka, kb = kt[:Eh, :], kt[Eh:, :]
    if use_rope:
        cq, sq = cq_ref[...], sq_ref[...]        # (L, Eh)
        ck, sk = ck_ref[...], sk_ref[...]        # (Eh, S_pad)
        qa, qb = qa * cq - qb * sq, qb * cq + qa * sq
        ka, kb = ka * ck - kb * sk, kb * ck + ka * sk
    qa = qa.astype(jnp.bfloat16)
    qb = qb.astype(jnp.bfloat16)
    ka = ka.astype(jnp.bfloat16)
    kb = kb.astype(jnp.bfloat16)

    if s_valid != S_pad:
        pad_ok = lax.broadcasted_iota(jnp.int32, (L, S_pad), 1) < s_valid

    inv_h = 1.0 / float(H)
    for h in range(H):
        c0, c1 = h * half, (h + 1) * half
        d0, d1 = h * hd, (h + 1) * hd
        s = jnp.dot(qa[:, c0:c1], ka[c0:c1, :], preferred_element_type=jnp.float32)
        s = s + jnp.dot(qb[:, c0:c1], kb[c0:c1, :], preferred_element_type=jnp.float32)
        if has_bias:
            b = bias_ref[0, h] if bias_heads > 1 else bias_ref[0, 0]
            s = s + b.astype(jnp.float32)
        if s_valid != S_pad:
            s = jnp.where(pad_ok, s, -jnp.inf)
        # softmax in f32; EUP reciprocal frees VALU slots.  Fully-masked rows yield
        # NaN (matches torch softmax-of-all--inf).
        s = s - jnp.max(s, axis=-1, keepdims=True)
        e = jnp.exp(s)
        w = e * pl.reciprocal(jnp.sum(e, axis=-1, keepdims=True), approx=True)
        vh = v_ref[0, :, d0:d1]                                   # (S_pad, hd) bf16
        o_ref[0, :, d0:d1] = jnp.dot(w.astype(jnp.bfloat16), vh,
                                     preferred_element_type=jnp.float32
                                     ).astype(o_ref.dtype)
        if weights_mode == "avg":
            if H == 1:
                w_ref[0] = (w * inv_h).astype(w_ref.dtype)
            elif h == 0:
                w_ref[0] = w.astype(w_ref.dtype)
            elif h == H - 1:
                w_ref[0] = ((w_ref[0] + w) * inv_h).astype(w_ref.dtype)
            else:
                w_ref[0] = (w_ref[0] + w).astype(w_ref.dtype)
        else:  # "full"
            w_ref[0, h] = w.astype(w_ref.dtype)


def attention_full_pallas(q, kt, v, bias, rope, *, num_head, s_valid,
                          weights_mode, compute_dtype, vmem_limit):
    N, L, E = q.shape
    S_pad = v.shape[1]
    hd = E // num_head
    Eh = E // 2
    use_rope = rope is not None
    has_bias = bias is not None
    bias_heads = bias.shape[1] if has_bias else 0

    kernel = functools.partial(
        _attn_full_kernel, num_head=num_head, head_dim=hd, s_valid=s_valid,
        use_rope=use_rope, has_bias=has_bias, bias_heads=bias_heads,
        weights_mode=weights_mode, compute_dtype=compute_dtype)

    in_specs = []
    args = []
    if has_bias:
        Nb, Hb = bias.shape[0], bias.shape[1]
        bmap = (lambda n: (0, 0, 0, 0)) if Nb == 1 else (lambda n: (n, 0, 0, 0))
        in_specs.append(pl.BlockSpec((1, Hb, L, S_pad), bmap))
        args.append(bias)
    in_specs += [
        pl.BlockSpec((1, L, E), lambda n: (n, 0, 0)),
        pl.BlockSpec((E, S_pad), lambda n: (0, n)),
        pl.BlockSpec((1, S_pad, E), lambda n: (n, 0, 0)),
    ]
    args += [q, kt, v]
    if use_rope:
        cq, sq, ckt, skt = rope
        in_specs += [
            pl.BlockSpec((L, Eh), lambda n: (0, 0)),
            pl.BlockSpec((L, Eh), lambda n: (0, 0)),
            pl.BlockSpec((Eh, S_pad), lambda n: (0, 0)),
            pl.BlockSpec((Eh, S_pad), lambda n: (0, 0)),
        ]
        args += [cq, sq, ckt, skt]

    o_shape = jax.ShapeDtypeStruct((N, L, E), jnp.bfloat16)
    o_spec = pl.BlockSpec((1, L, E), lambda n: (n, 0, 0))
    if weights_mode == "avg":
        # f32 for the head-averaged accumulation (H x smaller than the per-head tensor).
        w_shape = jax.ShapeDtypeStruct((N, L, S_pad), jnp.float32)
        w_spec = pl.BlockSpec((1, L, S_pad), lambda n: (n, 0, 0))
    else:
        w_shape = jax.ShapeDtypeStruct((N, num_head, L, S_pad), jnp.bfloat16)
        w_spec = pl.BlockSpec((1, num_head, L, S_pad), lambda n: (n, 0, 0, 0))

    o, w = pl.pallas_call(
        kernel,
        out_shape=(o_shape, w_shape),
        grid=(N,),
        in_specs=in_specs,
        out_specs=(o_spec, w_spec),
        compiler_params=pltpu.CompilerParams(
            dimension_semantics=("parallel",),
            vmem_limit_bytes=vmem_limit),
    )(*args)
    return o, w


# ---------------------------------------------------------------------------
# attention kernel B: flash-style online softmax over S tiles (need_weights=False).
# ---------------------------------------------------------------------------
def _attn_flash_kernel(*refs, num_head, head_dim, s_valid, s_pad, use_rope,
                       has_bias, bias_heads, compute_dtype):
    i = 0
    bias_ref = refs[i] if has_bias else None
    if has_bias:
        i += 1
    q_ref, kt_ref, v_ref = refs[i], refs[i + 1], refs[i + 2]
    i += 3
    if use_rope:
        cq_ref, sq_ref, ck_ref, sk_ref = refs[i:i + 4]
        i += 4
    o_ref = refs[i]
    m_sc, l_sc, acc_sc = refs[i + 1], refs[i + 2], refs[i + 3]
    q_sc = refs[i + 4] if use_rope else None

    H, hd = num_head, head_dim
    half = hd // 2
    E = H * hd
    Eh = E // 2
    L = q_ref.shape[1]
    TS = kt_ref.shape[1]
    kv = pl.program_id(1)
    nkv = pl.num_programs(1)

    @pl.when(kv == 0)
    def _init():
        m_sc[...] = jnp.full(m_sc.shape, -jnp.inf, m_sc.dtype)
        l_sc[...] = jnp.zeros(l_sc.shape, l_sc.dtype)
        acc_sc[...] = jnp.zeros(acc_sc.shape, acc_sc.dtype)
        if use_rope:
            qv = q_ref[0].astype(compute_dtype)
            qa0, qb0 = qv[:, :Eh], qv[:, Eh:]
            cq, sq = cq_ref[...], sq_ref[...]
            q_sc[:, :Eh] = (qa0 * cq - qb0 * sq).astype(q_sc.dtype)
            q_sc[:, Eh:] = (qb0 * cq + qa0 * sq).astype(q_sc.dtype)

    if use_rope:
        qfull = q_sc[...]
    else:
        qfull = q_ref[0].astype(jnp.bfloat16)
    qa_all, qb_all = qfull[:, :Eh], qfull[:, Eh:]

    kdt = compute_dtype if use_rope else jnp.bfloat16
    kt = kt_ref[...].astype(kdt)           # (E, TS)
    ka, kb = kt[:Eh, :], kt[Eh:, :]
    if use_rope:
        ck, sk = ck_ref[...], sk_ref[...]
        ka, kb = ka * ck - kb * sk, kb * ck + ka * sk
    ka = ka.astype(jnp.bfloat16)
    kb = kb.astype(jnp.bfloat16)

    if s_valid != s_pad:
        col = kv * TS + lax.broadcasted_iota(jnp.int32, (L, TS), 1)
        pad_ok = col < s_valid

    for h in range(H):
        c0, c1 = h * half, (h + 1) * half
        d0, d1 = h * hd, (h + 1) * hd
        s = jnp.dot(qa_all[:, c0:c1], ka[c0:c1, :], preferred_element_type=jnp.float32)
        s = s + jnp.dot(qb_all[:, c0:c1], kb[c0:c1, :],
                        preferred_element_type=jnp.float32)
        if has_bias:
            b = bias_ref[0, h] if bias_heads > 1 else bias_ref[0, 0]
            s = s + b.astype(jnp.float32)
        if s_valid != s_pad:
            s = jnp.where(pad_ok, s, -jnp.inf)
        m_prev = m_sc[h]                                       # (L, 1)
        m_new = jnp.maximum(m_prev, jnp.max(s, axis=-1, keepdims=True))
        m_safe = jnp.where(m_new == -jnp.inf, 0.0, m_new)      # guard all-masked rows
        alpha = jnp.exp(m_prev - m_safe)
        p = jnp.exp(s - m_safe)
        l_sc[h] = alpha * l_sc[h] + jnp.sum(p, axis=-1, keepdims=True)
        acc_sc[:, d0:d1] = alpha * acc_sc[:, d0:d1] + jnp.dot(
            p.astype(jnp.bfloat16), v_ref[0, :, d0:d1],
            preferred_element_type=jnp.float32)
        m_sc[h] = m_new

    @pl.when(kv == nkv - 1)
    def _fin():
        for h in range(H):
            d0, d1 = h * hd, (h + 1) * hd
            inv = pl.reciprocal(l_sc[h], approx=True)          # (L, 1)
            o_ref[0, :, d0:d1] = (acc_sc[:, d0:d1] * inv).astype(o_ref.dtype)


def attention_flash_pallas(q, kt, v, bias, rope, *, num_head, s_valid,
                           compute_dtype, vmem_limit):
    N, L, E = q.shape
    S_pad = v.shape[1]
    hd = E // num_head
    Eh = E // 2
    use_rope = rope is not None
    has_bias = bias is not None
    bias_heads = bias.shape[1] if has_bias else 0
    TS = _pick_kv_tile(S_pad)
    KV = S_pad // TS

    kernel = functools.partial(
        _attn_flash_kernel, num_head=num_head, head_dim=hd, s_valid=s_valid,
        s_pad=S_pad, use_rope=use_rope, has_bias=has_bias,
        bias_heads=bias_heads, compute_dtype=compute_dtype)

    in_specs = []
    args = []
    if has_bias:
        Nb, Hb = bias.shape[0], bias.shape[1]
        bmap = ((lambda n, j: (0, 0, 0, j)) if Nb == 1
                else (lambda n, j: (n, 0, 0, j)))
        in_specs.append(pl.BlockSpec((1, Hb, L, TS), bmap))
        args.append(bias)
    in_specs += [
        pl.BlockSpec((1, L, E), lambda n, j: (n, 0, 0)),
        pl.BlockSpec((E, TS), lambda n, j: (0, n * KV + j)),
        pl.BlockSpec((1, TS, E), lambda n, j: (n, j, 0)),
    ]
    args += [q, kt, v]
    if use_rope:
        cq, sq, ckt, skt = rope
        in_specs += [
            pl.BlockSpec((L, Eh), lambda n, j: (0, 0)),
            pl.BlockSpec((L, Eh), lambda n, j: (0, 0)),
            pl.BlockSpec((Eh, TS), lambda n, j: (0, j)),
            pl.BlockSpec((Eh, TS), lambda n, j: (0, j)),
        ]
        args += [cq, sq, ckt, skt]

    scratch = [pltpu.VMEM((num_head, L, 1), jnp.float32),   # running max
               pltpu.VMEM((num_head, L, 1), jnp.float32),   # running denom
               pltpu.VMEM((L, E), jnp.float32)]             # output accumulator
    if use_rope:
        scratch.append(pltpu.VMEM((L, E), jnp.bfloat16))    # rotated q (once per n)

    return pl.pallas_call(
        kernel,
        out_shape=jax.ShapeDtypeStruct((N, L, E), jnp.bfloat16),
        grid=(N, KV),
        in_specs=in_specs,
        out_specs=pl.BlockSpec((1, L, E), lambda n, j: (n, 0, 0)),
        scratch_shapes=scratch,
        compiler_params=pltpu.CompilerParams(
            dimension_semantics=("parallel", "arbitrary"),
            vmem_limit_bytes=vmem_limit),
    )(*args)


# ---------------------------------------------------------------------------
# module wrapper (deterministic parameter init, no checkpoint loading)
# ---------------------------------------------------------------------------
class MultiheadAttentionWithRoPEPallas:
    def __init__(self, embed_dim, num_head, dropout=0.0, bias=True, use_rope=True,
                 key=None):
        assert embed_dim % num_head == 0
        self.embed_dim = embed_dim
        self.num_head = num_head
        self.head_dim = embed_dim // num_head
        self.use_rope = use_rope
        if use_rope:
            assert self.head_dim % 2 == 0
        E = embed_dim
        key = jax.random.PRNGKey(0) if key is None else key
        k1, k2 = jax.random.split(key)
        # xavier_uniform_ on (3E, E)
        bound_in = math.sqrt(6.0 / (E + 3 * E))
        self.in_proj_weight = jax.random.uniform(
            k1, (3 * E, E), jnp.float32, -bound_in, bound_in)
        self.in_proj_bias = jnp.zeros((3 * E,), jnp.float32)          # constant_(0.)
        # nn.Linear default init (kaiming_uniform a=sqrt(5)) -> U(-1/sqrt(E), 1/sqrt(E))
        bound_out = 1.0 / math.sqrt(E)
        self.out_proj_weight = jax.random.uniform(
            k2, (E, E), jnp.float32, -bound_out, bound_out)
        self.out_proj_bias = jnp.zeros((E,), jnp.float32)             # constant_(0.)
        # TODO(synk): bias=False module flag is represented with zero biases here
        #             (numerically identical forward pass).

        # kernel-ready parameters:
        #   * q/k projection rows permuted into the global [a-halves | b-halves] layout
        #     (scores are invariant to a common q/k permutation; RoPE becomes one
        #     full-width VPU pass with no concats / pair-swap matmul),
        #   * 1/sqrt(head_dim) folded into the q projection (RoPE is linear).
        perm = np.asarray(_ab_perm(E, self.head_dim))
        scale = math.sqrt(1.0 / float(self.head_dim))
        w_q, w_k, w_v = np.split(np.asarray(self.in_proj_weight), 3, axis=0)
        b_q, b_k, b_v = np.split(np.asarray(self.in_proj_bias), 3)
        self._wt_q = jnp.asarray((scale * w_q[perm]).T, jnp.bfloat16)     # (E, E)
        self._b_q = jnp.asarray(scale * b_q[perm], jnp.float32).reshape(1, E)
        self._wt_k = jnp.asarray(w_k[perm].T, jnp.bfloat16)               # (E, E)
        self._b_k = jnp.asarray(b_k[perm], jnp.float32).reshape(1, E)
        self._wt_v = jnp.asarray(w_v.T, jnp.bfloat16)                     # (E, E)
        self._b_v = jnp.asarray(b_v, jnp.float32).reshape(1, E)
        self._wt_out = jnp.asarray(np.asarray(self.out_proj_weight).T, jnp.bfloat16)
        self._b_out = jnp.asarray(self.out_proj_bias, jnp.float32).reshape(1, E)

        self._cdt = _compute_dtype()
        self._vmem = _vmem_limit_bytes()
        self._rope_cache = {}

    # head-tiled, cached RoPE tables for the a|b layout (k tables transposed).
    def _rope(self, L, S_pad):
        cache_key = (int(L), int(S_pad))
        tabs = self._rope_cache.get(cache_key)
        if tabs is None:
            H, hd = self.num_head, self.head_dim
            cq, sq = rope_tables(L, hd)            # (L, half)
            ck, sk = rope_tables(S_pad, hd)        # (S_pad, half)
            cq = jnp.tile(cq, (1, H)).astype(self._cdt)     # (L, E/2)
            sq = jnp.tile(sq, (1, H)).astype(self._cdt)
            ckt = jnp.tile(ck, (1, H)).T.astype(self._cdt)  # (E/2, S_pad)
            skt = jnp.tile(sk, (1, H)).T.astype(self._cdt)
            tabs = (cq, sq, ckt, skt)
            self._rope_cache[cache_key] = tabs
        return tabs

    def __call__(self, query, key_, value, need_weights=True, attn_mask=None,
                 average_attn_weights=True, distance_bias=None):
        is_batched = query.ndim == 3
        if not is_batched:
            query, key_, value = query[None], key_[None], value[None]
        N, L, E = query.shape
        S = key_.shape[1]
        H, hd = self.num_head, self.head_dim
        S_pad = max(_round_up(S, 128), 128)    # lane-dense S (pad masked in-kernel)

        # --- projections (bf16 MXU, f32 accumulate; k emitted pre-transposed) -------
        xq = query.reshape(N * L, E).astype(jnp.bfloat16)
        q = linear_pallas(xq, self._wt_q, self._b_q, jnp.bfloat16,
                          vmem_limit=self._vmem).reshape(N, L, E)

        key_b = key_.astype(jnp.bfloat16)
        if S_pad != S:
            key_b = jnp.pad(key_b, ((0, 0), (0, S_pad - S), (0, 0)))
        if value is key_:
            value_b = key_b
        else:
            value_b = value.astype(jnp.bfloat16)
            if S_pad != S:
                value_b = jnp.pad(value_b, ((0, 0), (0, S_pad - S), (0, 0)))

        kt = linear_pallas(key_b.reshape(N * S_pad, E), self._wt_k, self._b_k,
                           jnp.bfloat16, transpose_out=True,
                           vmem_limit=self._vmem)                     # (E, N*S_pad)
        v = linear_pallas(value_b.reshape(N * S_pad, E), self._wt_v, self._b_v,
                          jnp.bfloat16,
                          vmem_limit=self._vmem).reshape(N, S_pad, E)

        # --- additive bias (bf16, lane-padded) ---------------------------------------
        bias = _canonical_bias(attn_mask, distance_bias, N, H, L, S)
        if bias is not None:
            if S_pad != S:
                bias = jnp.pad(bias, ((0, 0), (0, 0), (0, 0), (0, S_pad - S)))
            bias = bias.astype(jnp.bfloat16)

        rope = self._rope(L, S_pad) if self.use_rope else None

        # TODO(synk): the PyTorch need_weights=False branch feeds bool masks to
        # F.scaled_dot_product_attention (True = keep) while the weights branch uses
        # the canonical additive convention (True = masked out); we use the canonical
        # convention consistently for both paths.
        if not need_weights:
            o = attention_flash_pallas(q, kt, v, bias, rope, num_head=H,
                                       s_valid=S, compute_dtype=self._cdt,
                                       vmem_limit=self._vmem)
            w = None
        else:
            wm = "avg" if average_attn_weights else "full"
            o, w_pad = attention_full_pallas(q, kt, v, bias, rope, num_head=H,
                                             s_valid=S, weights_mode=wm,
                                             compute_dtype=self._cdt,
                                             vmem_limit=self._vmem)
            w = w_pad[..., :S]
            if w.dtype != jnp.float32:
                w = w.astype(jnp.float32)

        out = linear_pallas(o.reshape(N * L, E), self._wt_out, self._b_out,
                            jnp.float32, vmem_limit=self._vmem).reshape(N, L, E)

        if not is_batched:
            out = out[0]
            if w is not None:
                w = w[0]
        return out, w


# ---------------------------------------------------------------------------
# pure-JAX reference (mirrors the PyTorch math: original weights, interleaved RoPE)
# ---------------------------------------------------------------------------
def _rope_ref(x):  # x: (N, T, H, hd), torchtune interleaved rotation
    N, T, H, hd = x.shape
    half = hd // 2
    theta = 1.0 / (10000.0 ** (jnp.arange(0, hd, 2, dtype=jnp.float32) / hd))
    ang = jnp.arange(T, dtype=jnp.float32)[:, None] * theta[None, :]
    cos = jnp.cos(ang)[None, :, None, :]
    sin = jnp.sin(ang)[None, :, None, :]
    xs = x.reshape(N, T, H, half, 2)
    x0, x1 = xs[..., 0], xs[..., 1]
    out = jnp.stack([x0 * cos - x1 * sin, x1 * cos + x0 * sin], axis=-1)
    return out.reshape(N, T, H, hd)


def _canon_ref(m, N, H, L, S):
    m = jnp.asarray(m)
    if m.dtype == jnp.bool_:
        m = jnp.where(m, -jnp.inf, 0.0)
    m = jnp.asarray(m, jnp.float32)
    if m.ndim == 2:
        return m[None, None]
    if m.ndim == 3:
        return m[None] if m.shape[0] == 1 else m.reshape(N, H, L, S)
    return m


def ref_forward(mod, query, key_, value, attn_mask=None, distance_bias=None,
                average_attn_weights=True):
    N, L, E = query.shape
    S = key_.shape[1]
    H, hd = mod.num_head, mod.head_dim
    w_q, w_k, w_v = jnp.split(mod.in_proj_weight, 3, axis=0)
    b_q, b_k, b_v = jnp.split(mod.in_proj_bias, 3)
    q = query @ w_q.T + b_q
    k = key_ @ w_k.T + b_k
    v = value @ w_v.T + b_v
    if mod.use_rope:
        q = _rope_ref(q.reshape(N, L, H, hd)).reshape(N, L, E)
        k = _rope_ref(k.reshape(N, S, H, hd)).reshape(N, S, E)
    qh = q.reshape(N, L, H, hd).transpose(0, 2, 1, 3)
    kh = k.reshape(N, S, H, hd).transpose(0, 2, 1, 3)
    vh = v.reshape(N, S, H, hd).transpose(0, 2, 1, 3)
    s = jnp.einsum('nhld,nhsd->nhls', qh * math.sqrt(1.0 / hd), kh)
    if attn_mask is not None:
        s = s + _canon_ref(attn_mask, N, H, L, S)
    if distance_bias is not None:
        s = s + _canon_ref(distance_bias, N, H, L, S)
    w = jax.nn.softmax(s, axis=-1)
    o = jnp.einsum('nhls,nhsd->nhld', w, vh)
    o = o.transpose(0, 2, 1, 3).reshape(N, L, E)
    out = o @ mod.out_proj_weight.T + mod.out_proj_bias
    return out, (w.mean(axis=1) if average_attn_weights else w)


# ---------------------------------------------------------------------------
if __name__ == "__main__":
    root = jax.random.PRNGKey(0)
    kq, kk, kv, kp, kd = jax.random.split(root, 5)

    N, L, S, E, H = 2, 8, 8, 32, 4
    query = jax.random.normal(kq, (N, L, E), jnp.float32)
    key_in = jax.random.normal(kk, (N, S, E), jnp.float32)
    value = jax.random.normal(kv, (N, S, E), jnp.float32)

    mha = MultiheadAttentionWithRoPEPallas(E, H, bias=True, use_rope=True, key=kp)

    # bf16 MXU operands + bf16 RoPE/bias (on v6e/v7x) are the documented precision
    # trade vs the f32 reference -> tolerance 3e-2.
    def check(x, y, name, atol=3e-2, rtol=3e-2):
        x = jax.block_until_ready(x)
        x = jnp.asarray(x, jnp.float32)
        assert bool(jnp.all(jnp.isfinite(x))), name
        err = float(jnp.max(jnp.abs(x - jnp.asarray(y, jnp.float32))))
        assert jnp.allclose(x, y, atol=atol, rtol=rtol), (name, err)

    # 1) default path: distinct q/k/v, no mask, averaged weights
    out, attn_w = mha(query, key_in, value)
    ref_out, ref_w = ref_forward(mha, query, key_in, value)
    assert out.shape == (N, L, E) and attn_w.shape == (N, L, S)
    check(out, ref_out, "out (default)")
    check(attn_w, ref_w, "weights (default)")

    # 2) bool causal mask + float distance_bias, per-head weights
    causal = jnp.arange(S)[None, :] > jnp.arange(L)[:, None]   # True = masked out
    dist_b = 0.1 * jax.random.normal(kd, (L, S), jnp.float32)
    out2, w2 = mha(query, key_in, value, attn_mask=causal,
                   average_attn_weights=False, distance_bias=dist_b)
    ref_out2, ref_w2 = ref_forward(mha, query, key_in, value, attn_mask=causal,
                                   distance_bias=dist_b, average_attn_weights=False)
    assert out2.shape == (N, L, E) and w2.shape == (N, H, L, S)
    check(out2, ref_out2, "out (masked)")
    check(w2, ref_w2, "weights (masked)")

    # 3) self-attention inputs
    out3, w3 = mha(query, query, query)
    ref_out3, ref_w3 = ref_forward(mha, query, query, query)
    check(out3, ref_out3, "out (self-attn)")
    check(w3, ref_w3, "weights (self-attn)")

    # 4) need_weights=False -> flash-tiled online-softmax kernel
    out4, w4 = mha(query, key_in, value, need_weights=False, attn_mask=causal)
    assert w4 is None
    ref_out4, _ = ref_forward(mha, query, key_in, value, attn_mask=causal)
    check(out4, ref_out4, "out (flash, need_weights=False)")

    print("KERNEL_OK")
</pallas_src>

<mosaic_0001>
module attributes {stable_mosaic.version = 11 : i64} {
  func.func @_linear_kernel(%arg0: i32, %arg1: i32, %arg2: i32, %arg3: memref<16x32xbf16, #tpu.memory_space<vmem>>, %arg4: memref<32x32xbf16, #tpu.memory_space<vmem>>, %arg5: memref<1x32xf32, #tpu.memory_space<vmem>>, %arg6: memref<16x32xbf16, #tpu.memory_space<vmem>>, %arg7: memref<16x32xf32, #tpu.memory_space<vmem>>) attributes {dimension_semantics = [#tpu.dimension_semantics<parallel>, #tpu.dimension_semantics<parallel>, #tpu.dimension_semantics<arbitrary>], iteration_bounds = array<i64: 1, 1, 1>, scalar_prefetch = 0 : i64, scratch_operands = 1 : i64, tpu.core_type = #tpu.core_type<tc>, window_params = [{transform_indices = @transform_0, window_bounds = array<i64: 16, 32>}, {transform_indices = @transform_1, window_bounds = array<i64: 32, 32>}, {transform_indices = @transform_2, window_bounds = array<i64: 1, 32>}, {transform_indices = @transform_3, window_bounds = array<i64: 16, 32>}]} {
    %c0_i32 = arith.constant 0 : i32
    %0 = arith.cmpi eq, %arg2, %c0_i32 : i32
    %1 = arith.extui %0 : i1 to i32
    %c0_i32_0 = arith.constant 0 : i32
    %2 = arith.cmpi ne, %1, %c0_i32_0 : i32
    scf.if %2 {
      %cst_10 = arith.constant 0.000000e+00 : f32
      %12 = vector.broadcast %cst_10 : f32 to vector<16x32xf32>
      %c0_11 = arith.constant 0 : index
      %c0_12 = arith.constant 0 : index
      %13 = vector.load %arg7[%c0_11, %c0_12] : memref<16x32xf32, #tpu.memory_space<vmem>>, vector<16x32xf32>
      tpu.vector_store %arg7[%c0_11, %c0_12], %12 {strides = array<i32>} : memref<16x32xf32, #tpu.memory_space<vmem>>, vector<16x32xf32>,
    } else {
    }
    %c0 = arith.constant 0 : index
    %c0_1 = arith.constant 0 : index
    %3 = vector.load %arg7[%c0, %c0_1] : memref<16x32xf32, #tpu.memory_space<vmem>>, vector<16x32xf32>
    %c0_2 = arith.constant 0 : index
    %c0_3 = arith.constant 0 : index
    %4 = vector.load %arg3[%c0_2, %c0_3] : memref<16x32xbf16, #tpu.memory_space<vmem>>, vector<16x32xbf16>
    %c0_4 = arith.constant 0 : index
    %c0_5 = arith.constant 0 : index
    %5 = vector.load %arg4[%c0_4, %c0_5] : memref<32x32xbf16, #tpu.memory_space<vmem>>, vector<32x32xbf16>
    %cst = arith.constant dense<0.000000e+00> : vector<16x32xf32>
    %6 = tpu.matmul %4, %5, %cst {dimension_numbers = #tpu.dot_dimension_numbers<[1], [0], [0], [1], [0, 0, 1, 1], [], []>} : vector<16x32xbf16>, vector<32x32xbf16>, vector<16x32xf32> -> vector<16x32xf32>
    %7 = arith.addf %3, %6 : vector<16x32xf32>
    %c0_6 = arith.constant 0 : index
    %c0_7 = arith.constant 0 : index
    %8 = vector.load %arg7[%c0_6, %c0_7] : memref<16x32xf32, #tpu.memory_space<vmem>>, vector<16x32xf32>
    tpu.vector_store %arg7[%c0_6, %c0_7], %7 {strides = array<i32>} : memref<16x32xf32, #tpu.memory_space<vmem>>, vector<16x32xf32>,
    %c0_i32_8 = arith.constant 0 : i32
    %9 = arith.cmpi eq, %arg2, %c0_i32_8 : i32
    %10 = arith.extui %9 : i1 to i32
    %c0_i32_9 = arith.constant 0 : i32
    %11 = arith.cmpi ne, %10, %c0_i32_9 : i32
    scf.if %11 {
      %c0_10 = arith.constant 0 : index
      %c0_11 = arith.constant 0 : index
      %12 = vector.load %arg7[%c0_10, %c0_11] : memref<16x32xf32, #tpu.memory_space<vmem>>, vector<16x32xf32>
      %c0_12 = arith.constant 0 : index
      %c0_13 = arith.constant 0 : index
      %13 = vector.load %arg5[%c0_12, %c0_13] : memref<1x32xf32, #tpu.memory_space<vmem>>, vector<1x32xf32>
      %14 = vector.broadcast %13 : vector<1x32xf32> to vector<16x32xf32>
      %15 = arith.addf %12, %14 : vector<16x32xf32>
      %16 = arith.truncf %15 : vector<16x32xf32> to vector<16x32xbf16>
      %c0_14 = arith.constant 0 : index
      %c0_15 = arith.constant 0 : index
      %17 = vector.load %arg6[%c0_14, %c0_15] : memref<16x32xbf16, #tpu.memory_space<vmem>>, vector<16x32xbf16>
      tpu.vector_store %arg6[%c0_14, %c0_15], %16 {strides = array<i32>} : memref<16x32xbf16, #tpu.memory_space<vmem>>, vector<16x32xbf16>,
    } else {
    }
    return
  }
  func.func @transform_0(%arg0: i32, %arg1: i32, %arg2: i32) -> (i32, i32) {
    %c0_i32 = arith.constant 0 : i32
    return %arg0, %arg2 : i32, i32
  }
  func.func @transform_1(%arg0: i32, %arg1: i32, %arg2: i32) -> (i32, i32) {
    %c0_i32 = arith.constant 0 : i32
    return %arg2, %arg1 : i32, i32
  }
  func.func @transform_2(%arg0: i32, %arg1: i32, %arg2: i32) -> (i32, i32) {
    %c0_i32 = arith.constant 0 : i32
    %c0_i32_0 = arith.constant 0 : i32
    return %c0_i32, %arg1 : i32, i32
  }
  func.func @transform_3(%arg0: i32, %arg1: i32, %arg2: i32) -> (i32, i32) {
    %c0_i32 = arith.constant 0 : i32
    return %arg0, %arg1 : i32, i32
  }
}

</mosaic_0001>

<llo_original>
// kernel: tpu_custom_call.1
$region0: #{tpu_custom_call.1}
  #allocation0 [shape = 'u32[]', space=smem, size = 0x4, offset = 0x4, fixed_abs, tag = 'smem constant byte address 0x4 - core index']
  #allocation1 [shape = 'u32[72,128]{1,0:T(1,128)}', space=vmem, size = 0x9000, scoped, tag = 'internal scratch']
  #allocation2 [shape = 'f32[16,32]{1,0:T(8,128)}', space=vmem, size = 0x2000, scoped, tag = 'scratch operand']
  %s0 = inlined_call_operand.hbm [shape: bf16[16,32], index: 0, kind: input, shape index: {}]
  %s1 = inlined_call_operand.hbm [shape: bf16[32,32], index: 1, kind: input, shape index: {}]
  %s2 = inlined_call_operand.vmem [shape: f32[1,32], index: 2, kind: input, shape index: {}]
  %s3 = inlined_call_operand.hbm [shape: bf16[16,32], index: 3, kind: output, shape index: {}]
  %s4 = sld [smem:[#allocation0]]
  $region38: #{tpu_custom_call.1} parent=0
    _
  %s6 = ssub.s32 1, %s4
  %s7 = scalar_select 0, %s6, %s4
  $region1: #{tpu_custom_call.1} parent=0
    #allocation3 [shape = 'u8[4096]{0}', space=vmem, size = 0x1000, scoped, tag = 'input window, operand 0, single buffered']
    #allocation4 [shape = 's32[1]{0}', space=sflag, size = 0x4, scoped, tag = 'scoped memory for tpu_custom_call.1']
    #allocation5 [shape = 's32[1]{0}', space=sflag, size = 0x4, scoped, tag = 'scoped memory for tpu_custom_call.1']
    #allocation6 [shape = 'u8[8192]{0}', space=vmem, size = 0x2000, scoped, tag = 'input window, operand 1, single buffered']
    #allocation7 [shape = 's32[1]{0}', space=sflag, size = 0x4, scoped, tag = 'scoped memory for tpu_custom_call.1']
    #allocation8 [shape = 'u8[4096]{0}', space=vmem, size = 0x1000, scoped, tag = 'output window, operand 0, single buffered']
    %8 = vsyncpa [#allocation4], 0
    %9 = vsyncpa [#allocation7], 0
    %10 = vsyncpa [#allocation5], 0
    // Predicated region
    $region2: #{tpu_custom_call.1} parent=1 // pred_check
      _
    $region3: #{tpu_custom_call.1} parent=1 // pred_check_branch
      %12 = sbr.rel (0) target = $region5
    $region4: #{tpu_custom_call.1} parent=1 // pred_region
      %14 = vsyncadd [#allocation4], 0
      %s15 = sshll.u32 %s0, 4
      %s16 = int_to_ptr.hbm [resolvable:$true] %s15
      %s17 = sshll.u32 [#allocation3], 4
      %s18 = int_to_ptr.vmem [resolvable:$true] %s17
      %23 = dma.hbm_to_vmem [thread:$0]  %s16, 128, %s18, [#allocation4], 64, 64, 4
    $region5: #{tpu_custom_call.1} parent=1 // pred_fallthru
      _
    // Predicated region
    $region6: #{tpu_custom_call.1} parent=1 // pred_check
      _
    $region7: #{tpu_custom_call.1} parent=1 // pred_check_branch
      %25 = sbr.rel (0) target = $region9
    $region8: #{tpu_custom_call.1} parent=1 // pred_region
      %27 = vsyncadd [#allocation7], 0
      %s28 = sshll.u32 %s1, 4
      %s29 = int_to_ptr.hbm [resolvable:$true] %s28
      %s30 = sshll.u32 [#allocation6], 4
      %s31 = int_to_ptr.vmem [resolvable:$true] %s30
      %36 = dma.hbm_to_vmem [thread:$0]  %s29, 256, %s31, [#allocation7], 64, 64, 4
    $region9: #{tpu_custom_call.1} parent=1 // pred_fallthru
      _
    // Predicated region
    $region10: #{tpu_custom_call.1} parent=1 // pred_check
      _
    $region11: #{tpu_custom_call.1} parent=1 // pred_check_branch
      %38 = sbr.rel (0) target = $region13
    $region12: #{tpu_custom_call.1} parent=1 // pred_region
      _
    $region13: #{tpu_custom_call.1} parent=1 // pred_fallthru
      _
    // Predicated region
    $region14: #{tpu_custom_call.1} parent=1 // pred_check
      _
    $region15: #{tpu_custom_call.1} parent=1 // pred_check_branch
      %40 = sbr.rel (0) target = $region17
    $region16: #{tpu_custom_call.1} parent=1 // pred_region
      %42 = dma.done [#allocation4], 128
    $region17: #{tpu_custom_call.1} parent=1 // pred_fallthru
      _
    // Predicated region
    $region18: #{tpu_custom_call.1} parent=1 // pred_check
      _
    $region19: #{tpu_custom_call.1} parent=1 // pred_check_branch
      %44 = sbr.rel (0) target = $region21
    $region20: #{tpu_custom_call.1} parent=1 // pred_region
      %46 = dma.done [#allocation7], 256
    $region21: #{tpu_custom_call.1} parent=1 // pred_fallthru
      _
    %p48 = scmp.eq.s32.totalorder 0, 0
    // Predicated region
    $region22: #{tpu_custom_call.1} parent=1 // pred_check
      %p49 = pneg %p48
    $region23: #{tpu_custom_call.1} parent=1 // pred_check_branch
      %51 = sbr.rel (%p49) target = $region25
    $region24: #{tpu_custom_call.1} parent=1 // pred_region
      %vm52 = vcmask 261120
      %53 = vst.msk [vmem:[#allocation2] sm:$0xff] %vm52, 0.0
      %54 = vst.msk [vmem:[#allocation2 + $0x8] sm:$0xff] %vm52, 0.0
    $region25: #{tpu_custom_call.1} parent=1 // pred_fallthru
      _
    %v55 = vld [vmem:[#allocation2] sm:$0xff]
    %v56 = vld [vmem:[#allocation2 + $0x8] sm:$0xff]
    %v57 = vld [vmem:[#allocation3] sm:$0xf]
    %v58 = vld [vmem:[#allocation3 + $0x4] sm:$0xf]
    %v59 = vld [vmem:[#allocation6] sm:$0xf]
    %v60 = vld [vmem:[#allocation6 + $0x4] sm:$0xf]
    %v61 = vld [vmem:[#allocation6 + $0x8] sm:$0xf]
    %v62 = vld [vmem:[#allocation6 + $0xc] sm:$0xf]
    %v65 = vunpack.c.l.b16 %v57
    %v66 = vunpack.c.l.b16 %v58
    %v67 = vpack.c.b16 %v66, %v65
    %v72 = vunpack.c.l.b16 %v59
    %v73 = vunpack.c.l.b16 %v60
    %v74 = vunpack.c.l.b16 %v61
    %v75 = vunpack.c.l.b16 %v62
    %v76 = vpack.c.b16 %v73, %v72
    %v77 = vpack.c.b16 %v75, %v74
    %vm80 = vcmask 261120
    %v82 = vsel %vm80, %v67, 0
    %84 = vmatpush.bf16.msra.mxu0 0
    %85 = vmatpush.bf16.msra.mxu0 0
    %86 = vmatpush.bf16.msra.mxu0 0
    %87 = vmatpush.bf16.msra.mxu0 0
    %88 = vmatpush.bf16.msra.mxu0 0
    %89 = vmatpush.bf16.msra.mxu0 0
    %90 = vmatpush.bf16.msra.mxu0 %v77
    %91 = vmatpush.bf16.msra.mxu0 %v76
    %92 = vmatmul.bf16.gmra.mxu0 %v82
    %v93 = vpop.f32.mrf.mxu0
    %v94 = vadd.f32 0.0, %v93
    %v95 = vpop.f32.mrf.mxu0
    %v96 = vadd.f32 0.0, %v95
    %97 = vdwg.mxu0
    %v98 = vadd.f32 %v55, %v94
    %v99 = vadd.f32 %v56, %v96
    %100 = vst.msk [vmem:[#allocation2] sm:$0xff] %vm80, %v98
    %101 = vst.msk [vmem:[#allocation2 + $0x8] sm:$0xff] %vm80, %v99
    // Predicated region
    $region26: #{tpu_custom_call.1} parent=1 // pred_check
      %p102 = pneg %p48
    $region27: #{tpu_custom_call.1} parent=1 // pred_check_branch
      %104 = sbr.rel (%p102) target = $region29
    $region28: #{tpu_custom_call.1} parent=1 // pred_region
      %v105 = vld [vmem:[#allocation2] sm:$0xff]
      %v106 = vld [vmem:[#allocation2 + $0x8] sm:$0xff]
      %v107 = vld [vmem:[%s2] sm:$0x1]
      %v109 = vperm.slane %v107, 0
      %v111 = vadd.f32 %v105, %v109
      %v112 = vadd.f32 %v106, %v109
      %v113 = vpack.c.bf16 %v111, %v111
      %v114 = vpack.c.bf16 %v112, %v112
      %vm115 = vcmask 257024
      %116 = vst.msk [vmem:[#allocation8] sm:$0xf] %vm115, %v113
      %117 = vst.msk [vmem:[#allocation8 + $0x4] sm:$0xf] %vm115, %v114
    $region29: #{tpu_custom_call.1} parent=1 // pred_fallthru
      _
    // Predicated region
    $region30: #{tpu_custom_call.1} parent=1 // pred_check
      _
    $region31: #{tpu_custom_call.1} parent=1 // pred_check_branch
      %119 = sbr.rel (0) target = $region33
    $region32: #{tpu_custom_call.1} parent=1 // pred_region
      %121 = vsyncadd [#allocation5], 0
      %s122 = sshll.u32 [#allocation8], 4
      %s123 = int_to_ptr.vmem [resolvable:$true] %s122
      %s124 = sshll.u32 %s3, 4
      %s125 = int_to_ptr.hbm [resolvable:$true] %s124
      %130 = dma.vmem_to_hbm [thread:$0]  %s123, 128, %s125, [#allocation5], 64, 64, 4
    $region33: #{tpu_custom_call.1} parent=1 // pred_fallthru
      _
    // Predicated region
    $region34: #{tpu_custom_call.1} parent=1 // pred_check
      _
    $region35: #{tpu_custom_call.1} parent=1 // pred_check_branch
      %132 = sbr.rel (0) target = $region37
    $region36: #{tpu_custom_call.1} parent=1 // pred_region
      %134 = dma.done [#allocation5], 128
    $region37: #{tpu_custom_call.1} parent=1 // pred_fallthru
      _
    %135 = vsyncpa [#allocation4], 1
    %136 = vsyncpa [#allocation7], 1
    %137 = vsyncpa [#allocation5], 1

</llo_original>
